<compile_context>
chip_gen: v6e
topology: v6e:2x2x1
jax: 0.10.0
libtpu: 0.0.40
codegen_flags: <defaults>
</compile_context>

<pallas_src>
import jax
import jax.numpy as jnp
from jax import lax
from jax.experimental import pallas as pl
from jax.experimental.pallas import tpu as pltpu

EPS = 1e-5      # torch.nn.LayerNorm default eps
LANES = 128     # TPU lane width
HIDDEN = 8
GROUP = LANES // HIDDEN   # 16 logical rows packed per 128-lane vector
TILE_R = 1024             # packed rows per grid step (512 KiB f32 tile)


def _round_up(x, m):
    return (x + m - 1) // m * m


def _foo_kernel(x_ref, avg_ref, w_ref, b_ref, o_ref):
    # x_ref: (TILE_R, 128)  -- 16 logical rows of hidden=8 per 128-lane row
    # avg_ref: (128, 128)   -- block-diag averaging matrix (16 blocks of 1/8)
    # w_ref: (128, 128)     -- block-diag replication of diag(gamma) @ W.T
    # b_ref: (1, 128)       -- 16 copies of (beta @ W.T + b)
    x = x_ref[...].astype(jnp.float32)
    avg = avg_ref[...]

    # Segmented mean (per 8-lane group), broadcast back across the group lanes.
    mean_b = jnp.dot(x, avg, preferred_element_type=jnp.float32)
    c = x - mean_b

    # Projection matmul (c @ W') is independent of the variance/rsqrt chain:
    # the MXU and EUP/VPU work overlap.  Scaling by 1/std after the matmul is
    # exact because W' is block-diagonal and the scale is constant per group.
    proj = jnp.dot(c, w_ref[...], preferred_element_type=jnp.float32)
    var_b = jnp.dot(c * c, avg, preferred_element_type=jnp.float32)
    inv_std = lax.rsqrt(var_b + EPS)

    z = proj * inv_std + b_ref[...]
    o_ref[...] = jnp.maximum(z, 0.0).astype(o_ref.dtype)


def foo_forward(x, gamma, beta, w, b, *, tile_r=TILE_R):
    """x: (..., 8) float32. Returns same shape: relu(LN(x) @ W.T + b)."""
    orig_shape = x.shape
    h = orig_shape[-1]
    assert h == HIDDEN, f"expected hidden={HIDDEN}, got {h}"

    x2d = x.reshape(-1, h)
    rows = x2d.shape[0]

    # ---- Fold LayerNorm affine into the Linear (trace-time, wrapper-side) ----
    #   y = xn * gamma + beta ;  z = y @ W.T + b
    #   => z = xn @ (diag(gamma) @ W.T) + (beta @ W.T + b)
    w_eff = (gamma.astype(jnp.float32)[:, None] * w.astype(jnp.float32).T)   # (8,8)
    b_eff = beta.astype(jnp.float32) @ w.astype(jnp.float32).T \
        + b.astype(jnp.float32)                                              # (8,)

    # ---- Block-diagonal replication to 128 lanes (16 independent groups) ----
    eye_g = jnp.eye(GROUP, dtype=jnp.float32)
    w_bd = jnp.kron(eye_g, w_eff)                                            # (128,128)
    avg_bd = jnp.kron(eye_g, jnp.full((h, h), 1.0 / h, jnp.float32))         # (128,128)
    b_tile = jnp.tile(b_eff, GROUP).reshape(1, LANES)                        # (1,128)

    # ---- Pad rows so the lane-dense slab tiles evenly (all blocks aligned) --
    rows_g = _round_up(rows, GROUP)
    packed = rows_g // GROUP
    tile = min(tile_r, _round_up(packed, 8))
    packed_pad = _round_up(packed, tile)
    rows_pad = packed_pad * GROUP

    xp = jnp.pad(x2d, ((0, rows_pad - rows), (0, 0)))
    xw = xp.reshape(packed_pad, LANES)   # row-major => 16 logical rows / lane row

    grid = (packed_pad // tile,)
    out = pl.pallas_call(
        _foo_kernel,
        out_shape=jax.ShapeDtypeStruct((packed_pad, LANES), x.dtype),
        grid=grid,
        in_specs=[
            pl.BlockSpec((tile, LANES), lambda i: (i, 0)),    # x tiles (pipelined)
            pl.BlockSpec((LANES, LANES), lambda i: (0, 0)),   # avg matrix (resident)
            pl.BlockSpec((LANES, LANES), lambda i: (0, 0)),   # folded weight (resident)
            pl.BlockSpec((1, LANES), lambda i: (0, 0)),       # folded bias (resident)
        ],
        out_specs=pl.BlockSpec((tile, LANES), lambda i: (i, 0)),
        compiler_params=pltpu.CompilerParams(
            dimension_semantics=("parallel",)),
    )(xw, avg_bd, w_bd, b_tile)

    out = out.reshape(rows_pad, h)[:rows]
    return out.reshape(orig_shape)


def _reference(x, gamma, beta, w, b):
    mean = jnp.mean(x, axis=-1, keepdims=True)
    var = jnp.mean((x - mean) ** 2, axis=-1, keepdims=True)
    xn = (x - mean) / jnp.sqrt(var + EPS)
    y = xn * gamma + beta
    z = y @ w.T + b
    return jnp.maximum(z, 0.0)


if __name__ == "__main__":
    key = jax.random.PRNGKey(0)
    k_x, k_w, k_b, k_g, k_be, k_x2 = jax.random.split(key, 6)

    batch, seq, hidden = 2, 8, 8
    x = jax.random.normal(k_x, (batch, seq, hidden), dtype=jnp.float32)

    # Parameters (torch module shapes). Non-trivial gamma/beta exercise the
    # folded affine path.
    gamma = 1.0 + 0.1 * jax.random.normal(k_g, (hidden,), dtype=jnp.float32)
    beta = 0.1 * jax.random.normal(k_be, (hidden,), dtype=jnp.float32)
    bound = 1.0 / jnp.sqrt(jnp.float32(hidden))
    w = jax.random.uniform(k_w, (hidden, hidden), jnp.float32, -bound, bound)
    b = jax.random.uniform(k_b, (hidden,), jnp.float32, -bound, bound)

    out = foo_forward(x, gamma, beta, w, b)
    jax.block_until_ready(out)
    ref = _reference(x, gamma, beta, w, b)
    assert out.shape == x.shape
    assert jnp.allclose(out, ref, atol=2e-5, rtol=1e-5)

    # A second, larger ragged case that exercises multi-group packing + padding.
    x2 = jax.random.normal(k_x2, (4, 137, hidden), dtype=jnp.float32)
    out2 = foo_forward(x2, gamma, beta, w, b)
    jax.block_until_ready(out2)
    ref2 = _reference(x2, gamma, beta, w, b)
    assert out2.shape == x2.shape
    assert jnp.allclose(out2, ref2, atol=2e-5, rtol=1e-5)

    print("KERNEL_OK")
</pallas_src>

<mosaic_0001>
module attributes {stable_mosaic.version = 11 : i64} {
  func.func @_foo_kernel(%arg0: i32, %arg1: memref<8x128xf32, #tpu.memory_space<vmem>>, %arg2: memref<128x128xf32, #tpu.memory_space<vmem>>, %arg3: memref<128x128xf32, #tpu.memory_space<vmem>>, %arg4: memref<1x128xf32, #tpu.memory_space<vmem>>, %arg5: memref<8x128xf32, #tpu.memory_space<vmem>>) attributes {dimension_semantics = [#tpu.dimension_semantics<parallel>], iteration_bounds = array<i64: 1>, scalar_prefetch = 0 : i64, scratch_operands = 0 : i64, tpu.core_type = #tpu.core_type<tc>, window_params = [{transform_indices = @transform_0, window_bounds = array<i64: 8, 128>}, {pipeline_mode = #tpu.pipeline_mode<synchronous>, transform_indices = @transform_1, window_bounds = array<i64: 128, 128>}, {pipeline_mode = #tpu.pipeline_mode<synchronous>, transform_indices = @transform_2, window_bounds = array<i64: 128, 128>}, {pipeline_mode = #tpu.pipeline_mode<synchronous>, transform_indices = @transform_3, window_bounds = array<i64: 1, 128>}, {transform_indices = @transform_4, window_bounds = array<i64: 8, 128>}]} {
    %c0 = arith.constant 0 : index
    %c0_0 = arith.constant 0 : index
    %0 = vector.load %arg1[%c0, %c0_0] : memref<8x128xf32, #tpu.memory_space<vmem>>, vector<8x128xf32>
    %c0_1 = arith.constant 0 : index
    %c0_2 = arith.constant 0 : index
    %1 = vector.load %arg2[%c0_1, %c0_2] : memref<128x128xf32, #tpu.memory_space<vmem>>, vector<128x128xf32>
    %cst = arith.constant dense<0.000000e+00> : vector<8x128xf32>
    %2 = tpu.matmul %0, %1, %cst {dimension_numbers = #tpu.dot_dimension_numbers<[1], [0], [0], [1], [0, 0, 1, 1], [], []>} : vector<8x128xf32>, vector<128x128xf32>, vector<8x128xf32> -> vector<8x128xf32>
    %3 = arith.subf %0, %2 : vector<8x128xf32>
    %c0_3 = arith.constant 0 : index
    %c0_4 = arith.constant 0 : index
    %4 = vector.load %arg3[%c0_3, %c0_4] : memref<128x128xf32, #tpu.memory_space<vmem>>, vector<128x128xf32>
    %cst_5 = arith.constant dense<0.000000e+00> : vector<8x128xf32>
    %5 = tpu.matmul %3, %4, %cst_5 {dimension_numbers = #tpu.dot_dimension_numbers<[1], [0], [0], [1], [0, 0, 1, 1], [], []>} : vector<8x128xf32>, vector<128x128xf32>, vector<8x128xf32> -> vector<8x128xf32>
    %6 = arith.mulf %3, %3 : vector<8x128xf32>
    %cst_6 = arith.constant dense<0.000000e+00> : vector<8x128xf32>
    %7 = tpu.matmul %6, %1, %cst_6 {dimension_numbers = #tpu.dot_dimension_numbers<[1], [0], [0], [1], [0, 0, 1, 1], [], []>} : vector<8x128xf32>, vector<128x128xf32>, vector<8x128xf32> -> vector<8x128xf32>
    %cst_7 = arith.constant 9.99999974E-6 : f32
    %8 = vector.broadcast %cst_7 : f32 to vector<8x128xf32>
    %9 = arith.addf %7, %8 : vector<8x128xf32>
    %10 = math.rsqrt %9 : vector<8x128xf32>
    %11 = arith.mulf %5, %10 : vector<8x128xf32>
    %c0_8 = arith.constant 0 : index
    %c0_9 = arith.constant 0 : index
    %12 = vector.load %arg4[%c0_8, %c0_9] : memref<1x128xf32, #tpu.memory_space<vmem>>, vector<1x128xf32>
    %13 = vector.broadcast %12 : vector<1x128xf32> to vector<8x128xf32>
    %14 = arith.addf %11, %13 : vector<8x128xf32>
    %cst_10 = arith.constant 0.000000e+00 : f32
    %15 = vector.broadcast %cst_10 : f32 to vector<8x128xf32>
    %16 = arith.maximumf %14, %15 : vector<8x128xf32>
    %c0_11 = arith.constant 0 : index
    %c0_12 = arith.constant 0 : index
    %17 = vector.load %arg5[%c0_11, %c0_12] : memref<8x128xf32, #tpu.memory_space<vmem>>, vector<8x128xf32>
    tpu.vector_store %arg5[%c0_11, %c0_12], %16 {strides = array<i32>} : memref<8x128xf32, #tpu.memory_space<vmem>>, vector<8x128xf32>,
    return
  }
  func.func @transform_0(%arg0: i32) -> (i32, i32) {
    %c0_i32 = arith.constant 0 : i32
    %c0_i32_0 = arith.constant 0 : i32
    return %arg0, %c0_i32 : i32, i32
  }
  func.func @transform_1(%arg0: i32) -> (i32, i32) {
    %c0_i32 = arith.constant 0 : i32
    %c0_i32_0 = arith.constant 0 : i32
    %c0_i32_1 = arith.constant 0 : i32
    return %c0_i32, %c0_i32_0 : i32, i32
  }
  func.func @transform_2(%arg0: i32) -> (i32, i32) {
    %c0_i32 = arith.constant 0 : i32
    %c0_i32_0 = arith.constant 0 : i32
    %c0_i32_1 = arith.constant 0 : i32
    return %c0_i32, %c0_i32_0 : i32, i32
  }
  func.func @transform_3(%arg0: i32) -> (i32, i32) {
    %c0_i32 = arith.constant 0 : i32
    %c0_i32_0 = arith.constant 0 : i32
    %c0_i32_1 = arith.constant 0 : i32
    return %c0_i32, %c0_i32_0 : i32, i32
  }
  func.func @transform_4(%arg0: i32) -> (i32, i32) {
    %c0_i32 = arith.constant 0 : i32
    %c0_i32_0 = arith.constant 0 : i32
    return %arg0, %c0_i32 : i32, i32
  }
}

</mosaic_0001>

<llo_original>
// kernel: tpu_custom_call.1
$region0: #{tpu_custom_call.1}
  #allocation0 [shape = 'u32[]', space=smem, size = 0x4, offset = 0x4, fixed_abs, tag = 'smem constant byte address 0x4 - core index']
  #allocation1 [shape = 'u32[144,128]{1,0:T(1,128)}', space=vmem, size = 0x12000, scoped, tag = 'internal scratch']
  %s0 = inlined_call_operand.hbm [shape: f32[8,128], index: 0, kind: input, shape index: {}]
  %s1 = inlined_call_operand.hbm [shape: f32[128,128], index: 1, kind: input, shape index: {}]
  %s2 = inlined_call_operand.hbm [shape: f32[128,128], index: 2, kind: input, shape index: {}]
  %s3 = inlined_call_operand.vmem [shape: f32[1,128], index: 3, kind: input, shape index: {}]
  %s4 = inlined_call_operand.hbm [shape: f32[8,128], index: 4, kind: output, shape index: {}]
  %s5 = sld [smem:[#allocation0]]
  $region38: #{tpu_custom_call.1} parent=0
    _
  %s7 = ssub.s32 1, %s5
  %s8 = scalar_select 0, %s7, %s5
  $region1: #{tpu_custom_call.1} parent=0
    #allocation2 [shape = 'u8[4096]{0}', space=vmem, size = 0x1000, scoped, tag = 'input window, operand 0, single buffered']
    #allocation3 [shape = 's32[1]{0}', space=sflag, size = 0x4, scoped, tag = 'scoped memory for tpu_custom_call.1']
    #allocation4 [shape = 's32[1]{0}', space=sflag, size = 0x4, scoped, tag = 'scoped memory for tpu_custom_call.1']
    #allocation5 [shape = 'u8[65536]{0}', space=vmem, size = 0x10000, scoped, tag = 'input window, operand 1, single buffered']
    #allocation6 [shape = 's32[1]{0}', space=sflag, size = 0x4, scoped, tag = 'scoped memory for tpu_custom_call.1']
    #allocation7 [shape = 'u8[65536]{0}', space=vmem, size = 0x10000, scoped, tag = 'input window, operand 2, single buffered']
    #allocation8 [shape = 'u8[4096]{0}', space=vmem, size = 0x1000, scoped, tag = 'output window, operand 0, single buffered']
    %9 = vsyncpa [#allocation3], 0
    %10 = vsyncpa [#allocation6], 0
    %11 = vsyncpa [#allocation4], 0
    // Predicated region
    $region2: #{tpu_custom_call.1} parent=1 // pred_check
      _
    $region3: #{tpu_custom_call.1} parent=1 // pred_check_branch
      %13 = sbr.rel (0) target = $region5
    $region4: #{tpu_custom_call.1} parent=1 // pred_region
      %s15 = ssub.s32 128, 128
      %16 = vsyncadd [#allocation3], %s15
      %s18 = sshll.u32 [#allocation2], 4
      %s19 = int_to_ptr.vmem [resolvable:$true] %s18
      %21 = dma.hbm_to_vmem [thread:$0]  %s0, 128, %s19, [#allocation3]
    $region5: #{tpu_custom_call.1} parent=1 // pred_fallthru
      _
    // Predicated region
    $region6: #{tpu_custom_call.1} parent=1 // pred_check
      _
    $region7: #{tpu_custom_call.1} parent=1 // pred_check_branch
      %23 = sbr.rel (0) target = $region9
    $region8: #{tpu_custom_call.1} parent=1 // pred_region
      %s25 = ssub.s32 2048, 2048
      %26 = vsyncadd [#allocation6], %s25
      %s27 = sshll.u32 [#allocation5], 4
      %s28 = int_to_ptr.vmem [resolvable:$true] %s27
      %33 = dma.hbm_to_vmem [thread:$0]  %s1, 2048, %s28, [#allocation6], 128, 128, 8
    $region9: #{tpu_custom_call.1} parent=1 // pred_fallthru
      _
    // Predicated region
    $region10: #{tpu_custom_call.1} parent=1 // pred_check
      _
    $region11: #{tpu_custom_call.1} parent=1 // pred_check_branch
      %35 = sbr.rel (0) target = $region13
    $region12: #{tpu_custom_call.1} parent=1 // pred_region
      %s37 = ssub.s32 2048, 2048
      %38 = vsyncadd [#allocation6], %s37
      %s39 = sshll.u32 [#allocation7], 4
      %s40 = int_to_ptr.vmem [resolvable:$true] %s39
      %45 = dma.hbm_to_vmem [thread:$0]  %s2, 2048, %s40, [#allocation6], 128, 128, 8
    $region13: #{tpu_custom_call.1} parent=1 // pred_fallthru
      _
    // Predicated region
    $region14: #{tpu_custom_call.1} parent=1 // pred_check
      _
    $region15: #{tpu_custom_call.1} parent=1 // pred_check_branch
      %47 = sbr.rel (0) target = $region17
    $region16: #{tpu_custom_call.1} parent=1 // pred_region
      _
    $region17: #{tpu_custom_call.1} parent=1 // pred_fallthru
      _
    // Predicated region
    $region18: #{tpu_custom_call.1} parent=1 // pred_check
      _
    $region19: #{tpu_custom_call.1} parent=1 // pred_check_branch
      %49 = sbr.rel (0) target = $region21
    $region20: #{tpu_custom_call.1} parent=1 // pred_region
      %50 = dma.done [#allocation3], 128
    $region21: #{tpu_custom_call.1} parent=1 // pred_fallthru
      _
    // Predicated region
    $region22: #{tpu_custom_call.1} parent=1 // pred_check
      _
    $region23: #{tpu_custom_call.1} parent=1 // pred_check_branch
      %52 = sbr.rel (0) target = $region25
    $region24: #{tpu_custom_call.1} parent=1 // pred_region
      %53 = dma.done [#allocation6], 2048
    $region25: #{tpu_custom_call.1} parent=1 // pred_fallthru
      _
    // Predicated region
    $region26: #{tpu_custom_call.1} parent=1 // pred_check
      _
    $region27: #{tpu_custom_call.1} parent=1 // pred_check_branch
      %55 = sbr.rel (0) target = $region29
    $region28: #{tpu_custom_call.1} parent=1 // pred_region
      %56 = dma.done [#allocation6], 2048
    $region29: #{tpu_custom_call.1} parent=1 // pred_fallthru
      _
    %v57 = vld [vmem:[#allocation2] sm:$0xff]
    %v58 = vld [vmem:[#allocation5] sm:$0xff]
    %v59 = vld [vmem:[#allocation5 + $0x8] sm:$0xff]
    %v60 = vld [vmem:[#allocation5 + $0x10] sm:$0xff]
    %v61 = vld [vmem:[#allocation5 + $0x18] sm:$0xff]
    %v62 = vld [vmem:[#allocation5 + $0x20] sm:$0xff]
    %v63 = vld [vmem:[#allocation5 + $0x28] sm:$0xff]
    %v64 = vld [vmem:[#allocation5 + $0x30] sm:$0xff]
    %v65 = vld [vmem:[#allocation5 + $0x38] sm:$0xff]
    %v66 = vld [vmem:[#allocation5 + $0x40] sm:$0xff]
    %v67 = vld [vmem:[#allocation5 + $0x48] sm:$0xff]
    %v68 = vld [vmem:[#allocation5 + $0x50] sm:$0xff]
    %v69 = vld [vmem:[#allocation5 + $0x58] sm:$0xff]
    %v70 = vld [vmem:[#allocation5 + $0x60] sm:$0xff]
    %v71 = vld [vmem:[#allocation5 + $0x68] sm:$0xff]
    %v72 = vld [vmem:[#allocation5 + $0x70] sm:$0xff]
    %v73 = vld [vmem:[#allocation5 + $0x78] sm:$0xff]
    %74 = vmatprep.subr.mxu0 0.0
    %75 = vmatpush1.msra.mxu0 %v73
    %76 = vmatprep.subr.mxu0 0.0
    %77 = vmatpush1.msra.mxu0 %v72
    %78 = vmatprep.subr.mxu0 0.0
    %79 = vmatpush1.msra.mxu0 %v71
    %80 = vmatprep.subr.mxu0 0.0
    %81 = vmatpush1.msra.mxu0 %v70
    %82 = vmatprep.subr.mxu0 0.0
    %83 = vmatpush1.msra.mxu0 %v69
    %84 = vmatprep.subr.mxu0 0.0
    %85 = vmatpush1.msra.mxu0 %v68
    %86 = vmatprep.subr.mxu0 0.0
    %87 = vmatpush1.msra.mxu0 %v67
    %88 = vmatprep.subr.mxu0 0.0
    %89 = vmatpush1.msra.mxu0 %v66
    %90 = vmatprep.subr.mxu0 0.0
    %91 = vmatpush1.msra.mxu0 %v65
    %92 = vmatprep.subr.mxu0 0.0
    %93 = vmatpush1.msra.mxu0 %v64
    %94 = vmatprep.subr.mxu0 0.0
    %95 = vmatpush1.msra.mxu0 %v63
    %96 = vmatprep.subr.mxu0 0.0
    %97 = vmatpush1.msra.mxu0 %v62
    %98 = vmatprep.subr.mxu0 0.0
    %99 = vmatpush1.msra.mxu0 %v61
    %100 = vmatprep.subr.mxu0 0.0
    %101 = vmatpush1.msra.mxu0 %v60
    %102 = vmatprep.subr.mxu0 0.0
    %103 = vmatpush1.msra.mxu0 %v59
    %104 = vmatprep.subr.mxu0 0.0
    %105 = vmatpush1.msra.mxu0 %v58
    %106 = vmatprep.subr.mxu0 0.0
    %107 = vmatpush2.msra.mxu0 0.0
    %108 = vmatprep.subr.mxu0 0.0
    %109 = vmatpush2.msra.mxu0 0.0
    %110 = vmatprep.subr.mxu0 0.0
    %111 = vmatpush2.msra.mxu0 0.0
    %112 = vmatprep.subr.mxu0 0.0
    %113 = vmatpush2.msra.mxu0 0.0
    %114 = vmatprep.subr.mxu0 0.0
    %115 = vmatpush2.msra.mxu0 0.0
    %116 = vmatprep.subr.mxu0 0.0
    %117 = vmatpush2.msra.mxu0 0.0
    %118 = vmatprep.subr.mxu0 0.0
    %119 = vmatpush2.msra.mxu0 0.0
    %120 = vmatprep.subr.mxu0 0.0
    %121 = vmatpush2.msra.mxu0 0.0
    %122 = vmatprep.subr.mxu0 0.0
    %123 = vmatpush2.msra.mxu0 0.0
    %124 = vmatprep.subr.mxu0 0.0
    %125 = vmatpush2.msra.mxu0 0.0
    %126 = vmatprep.subr.mxu0 0.0
    %127 = vmatpush2.msra.mxu0 0.0
    %128 = vmatprep.subr.mxu0 0.0
    %129 = vmatpush2.msra.mxu0 0.0
    %130 = vmatprep.subr.mxu0 0.0
    %131 = vmatpush2.msra.mxu0 0.0
    %132 = vmatprep.subr.mxu0 0.0
    %133 = vmatpush2.msra.mxu0 0.0
    %134 = vmatprep.subr.mxu0 0.0
    %135 = vmatpush2.msra.mxu0 0.0
    %136 = vmatprep.subr.mxu0 0.0
    %137 = vmatpush2.msra.mxu0 0.0
    %138 = vmatprep.mubr.f32.mxu0 0.0
    %139 = vmatmul.mubr.f32.gmra.mxu0 %v57
    %v140 = vpop.f32.mrf.mxu0
    %v141 = vadd.f32 0.0, %v140
    %v142 = vpop.f32.mrf.mxu0
    %143 = vdwg.mxu0
    %v144 = vsub.f32 %v57, %v141
    %v145 = vld [vmem:[#allocation7] sm:$0xff]
    %v146 = vld [vmem:[#allocation7 + $0x8] sm:$0xff]
    %v147 = vld [vmem:[#allocation7 + $0x10] sm:$0xff]
    %v148 = vld [vmem:[#allocation7 + $0x18] sm:$0xff]
    %v149 = vld [vmem:[#allocation7 + $0x20] sm:$0xff]
    %v150 = vld [vmem:[#allocation7 + $0x28] sm:$0xff]
    %v151 = vld [vmem:[#allocation7 + $0x30] sm:$0xff]
    %v152 = vld [vmem:[#allocation7 + $0x38] sm:$0xff]
    %v153 = vld [vmem:[#allocation7 + $0x40] sm:$0xff]
    %v154 = vld [vmem:[#allocation7 + $0x48] sm:$0xff]
    %v155 = vld [vmem:[#allocation7 + $0x50] sm:$0xff]
    %v156 = vld [vmem:[#allocation7 + $0x58] sm:$0xff]
    %v157 = vld [vmem:[#allocation7 + $0x60] sm:$0xff]
    %v158 = vld [vmem:[#allocation7 + $0x68] sm:$0xff]
    %v159 = vld [vmem:[#allocation7 + $0x70] sm:$0xff]
    %v160 = vld [vmem:[#allocation7 + $0x78] sm:$0xff]
    %161 = vmatprep.subr.mxu0 0.0
    %162 = vmatpush1.msra.mxu0 %v160
    %163 = vmatprep.subr.mxu0 0.0
    %164 = vmatpush1.msra.mxu0 %v159
    %165 = vmatprep.subr.mxu0 0.0
    %166 = vmatpush1.msra.mxu0 %v158
    %167 = vmatprep.subr.mxu0 0.0
    %168 = vmatpush1.msra.mxu0 %v157
    %169 = vmatprep.subr.mxu0 0.0
    %170 = vmatpush1.msra.mxu0 %v156
    %171 = vmatprep.subr.mxu0 0.0
    %172 = vmatpush1.msra.mxu0 %v155
    %173 = vmatprep.subr.mxu0 0.0
    %174 = vmatpush1.msra.mxu0 %v154
    %175 = vmatprep.subr.mxu0 0.0
    %176 = vmatpush1.msra.mxu0 %v153
    %177 = vmatprep.subr.mxu0 0.0
    %178 = vmatpush1.msra.mxu0 %v152
    %179 = vmatprep.subr.mxu0 0.0
    %180 = vmatpush1.msra.mxu0 %v151
    %181 = vmatprep.subr.mxu0 0.0
    %182 = vmatpush1.msra.mxu0 %v150
    %183 = vmatprep.subr.mxu0 0.0
    %184 = vmatpush1.msra.mxu0 %v149
    %185 = vmatprep.subr.mxu0 0.0
    %186 = vmatpush1.msra.mxu0 %v148
    %187 = vmatprep.subr.mxu0 0.0
    %188 = vmatpush1.msra.mxu0 %v147
    %189 = vmatprep.subr.mxu0 0.0
    %190 = vmatpush1.msra.mxu0 %v146
    %191 = vmatprep.subr.mxu0 0.0
    %192 = vmatpush1.msra.mxu0 %v145
    %193 = vmatprep.subr.mxu0 0.0
    %194 = vmatpush2.msra.mxu0 0.0
    %195 = vmatprep.subr.mxu0 0.0
    %196 = vmatpush2.msra.mxu0 0.0
    %197 = vmatprep.subr.mxu0 0.0
    %198 = vmatpush2.msra.mxu0 0.0
    %199 = vmatprep.subr.mxu0 0.0
    %200 = vmatpush2.msra.mxu0 0.0
    %201 = vmatprep.subr.mxu0 0.0
    %202 = vmatpush2.msra.mxu0 0.0
    %203 = vmatprep.subr.mxu0 0.0
    %204 = vmatpush2.msra.mxu0 0.0
    %205 = vmatprep.subr.mxu0 0.0
    %206 = vmatpush2.msra.mxu0 0.0
    %207 = vmatprep.subr.mxu0 0.0
    %208 = vmatpush2.msra.mxu0 0.0
    %209 = vmatprep.subr.mxu0 0.0
    %210 = vmatpush2.msra.mxu0 0.0
    %211 = vmatprep.subr.mxu0 0.0
    %212 = vmatpush2.msra.mxu0 0.0
    %213 = vmatprep.subr.mxu0 0.0
    %214 = vmatpush2.msra.mxu0 0.0
    %215 = vmatprep.subr.mxu0 0.0
    %216 = vmatpush2.msra.mxu0 0.0
    %217 = vmatprep.subr.mxu0 0.0
    %218 = vmatpush2.msra.mxu0 0.0
    %219 = vmatprep.subr.mxu0 0.0
    %220 = vmatpush2.msra.mxu0 0.0
    %221 = vmatprep.subr.mxu0 0.0
    %222 = vmatpush2.msra.mxu0 0.0
    %223 = vmatprep.subr.mxu0 0.0
    %224 = vmatpush2.msra.mxu0 0.0
    %225 = vmatprep.mubr.f32.mxu0 0.0
    %226 = vmatmul.mubr.f32.gmra.mxu0 %v144
    %v227 = vpop.f32.mrf.mxu0
    %v228 = vadd.f32 0.0, %v227
    %v229 = vpop.f32.mrf.mxu0
    %230 = vdwg.mxu0
    %v231 = vmul.f32 %v144, %v144
    %232 = vmatprep.subr.mxu0 0.0
    %233 = vmatpush1.msra.mxu0 %v73
    %234 = vmatprep.subr.mxu0 0.0
    %235 = vmatpush1.msra.mxu0 %v72
    %236 = vmatprep.subr.mxu0 0.0
    %237 = vmatpush1.msra.mxu0 %v71
    %238 = vmatprep.subr.mxu0 0.0
    %239 = vmatpush1.msra.mxu0 %v70
    %240 = vmatprep.subr.mxu0 0.0
    %241 = vmatpush1.msra.mxu0 %v69
    %242 = vmatprep.subr.mxu0 0.0
    %243 = vmatpush1.msra.mxu0 %v68
    %244 = vmatprep.subr.mxu0 0.0
    %245 = vmatpush1.msra.mxu0 %v67
    %246 = vmatprep.subr.mxu0 0.0
    %247 = vmatpush1.msra.mxu0 %v66
    %248 = vmatprep.subr.mxu0 0.0
    %249 = vmatpush1.msra.mxu0 %v65
    %250 = vmatprep.subr.mxu0 0.0
    %251 = vmatpush1.msra.mxu0 %v64
    %252 = vmatprep.subr.mxu0 0.0
    %253 = vmatpush1.msra.mxu0 %v63
    %254 = vmatprep.subr.mxu0 0.0
    %255 = vmatpush1.msra.mxu0 %v62
    %256 = vmatprep.subr.mxu0 0.0
    %257 = vmatpush1.msra.mxu0 %v61
    %258 = vmatprep.subr.mxu0 0.0
    %259 = vmatpush1.msra.mxu0 %v60
    %260 = vmatprep.subr.mxu0 0.0
    %261 = vmatpush1.msra.mxu0 %v59
    %262 = vmatprep.subr.mxu0 0.0
    %263 = vmatpush1.msra.mxu0 %v58
    %264 = vmatprep.subr.mxu0 0.0
    %265 = vmatpush2.msra.mxu0 0.0
    %266 = vmatprep.subr.mxu0 0.0
    %267 = vmatpush2.msra.mxu0 0.0
    %268 = vmatprep.subr.mxu0 0.0
    %269 = vmatpush2.msra.mxu0 0.0
    %270 = vmatprep.subr.mxu0 0.0
    %271 = vmatpush2.msra.mxu0 0.0
    %272 = vmatprep.subr.mxu0 0.0
    %273 = vmatpush2.msra.mxu0 0.0
    %274 = vmatprep.subr.mxu0 0.0
    %275 = vmatpush2.msra.mxu0 0.0
    %276 = vmatprep.subr.mxu0 0.0
    %277 = vmatpush2.msra.mxu0 0.0
    %278 = vmatprep.subr.mxu0 0.0
    %279 = vmatpush2.msra.mxu0 0.0
    %280 = vmatprep.subr.mxu0 0.0
    %281 = vmatpush2.msra.mxu0 0.0
    %282 = vmatprep.subr.mxu0 0.0
    %283 = vmatpush2.msra.mxu0 0.0
    %284 = vmatprep.subr.mxu0 0.0
    %285 = vmatpush2.msra.mxu0 0.0
    %286 = vmatprep.subr.mxu0 0.0
    %287 = vmatpush2.msra.mxu0 0.0
    %288 = vmatprep.subr.mxu0 0.0
    %289 = vmatpush2.msra.mxu0 0.0
    %290 = vmatprep.subr.mxu0 0.0
    %291 = vmatpush2.msra.mxu0 0.0
    %292 = vmatprep.subr.mxu0 0.0
    %293 = vmatpush2.msra.mxu0 0.0
    %294 = vmatprep.subr.mxu0 0.0
    %295 = vmatpush2.msra.mxu0 0.0
    %296 = vmatprep.mubr.f32.mxu0 0.0
    %297 = vmatmul.mubr.f32.gmra.mxu0 %v231
    %v298 = vpop.f32.mrf.mxu0
    %v299 = vadd.f32 1e-05, %v298
    %v300 = vpop.f32.mrf.mxu0
    %301 = vdwg.mxu0
    %v302 = vrsqrt.pop %v299
    %v303 = vmul.f32 %v228, %v302
    %v304 = vld [vmem:[%s3] sm:$0x1]
    %v306 = vlaneseq
    %v307 = vshrl.u32 %v306, 7
    %v308 = vsub.s32 0, %v307
    %v309 = vrot.slane %v304, %v308
    %v311 = vadd.f32 %v303, %v309
    %v312 = vmax.f32 %v311, 0.0
    %313 = vst [vmem:[#allocation8] sm:$0xff] %v312
    // Predicated region
    $region30: #{tpu_custom_call.1} parent=1 // pred_check
      _
    $region31: #{tpu_custom_call.1} parent=1 // pred_check_branch
      %315 = sbr.rel (0) target = $region33
    $region32: #{tpu_custom_call.1} parent=1 // pred_region
      %s317 = ssub.s32 128, 128
      %318 = vsyncadd [#allocation4], %s317
      %s320 = sshll.u32 [#allocation8], 4
      %s321 = int_to_ptr.vmem [resolvable:$true] %s320
      %323 = dma.vmem_to_hbm [thread:$0]  %s321, 128, %s4, [#allocation4]
    $region33: #{tpu_custom_call.1} parent=1 // pred_fallthru
      _
    // Predicated region
    $region34: #{tpu_custom_call.1} parent=1 // pred_check
      _
    $region35: #{tpu_custom_call.1} parent=1 // pred_check_branch
      %325 = sbr.rel (0) target = $region37
    $region36: #{tpu_custom_call.1} parent=1 // pred_region
      %326 = dma.done [#allocation4], 128
    $region37: #{tpu_custom_call.1} parent=1 // pred_fallthru
      _
    %327 = vsyncpa [#allocation3], 1
    %328 = vsyncpa [#allocation6], 1
    %329 = vsyncpa [#allocation4], 1

</llo_original>
